<compile_context>
chip_gen: v5e
topology: v5e:2x2
jax: 0.10.0
libtpu: 0.0.40
codegen_flags: <defaults>
</compile_context>

<pallas_src>
import functools

import jax
import jax.numpy as jnp
from jax.experimental import pallas as pl
from jax.experimental.pallas import tpu as pltpu


def _round_up(n, m):
    return ((n + m - 1) // m) * m


def _vf_kernel(t_ref, x_ref, w1_ref, w1t_ref, b1_ref, w2_ref, b2_ref, o_ref):
    # t_ref  : SMEM (1,)     f32    scalar ODE time
    # x_ref  : VMEM (tb, D)  f32    current batch tile (unpadded features)
    # w1_ref : VMEM (D, Hp)  bf16   first-layer weights, x part of the concat
    # w1t_ref: VMEM (1, Hp)  f32    first-layer weights, time row W1[D]
    # b1_ref : VMEM (1, Hp)  f32
    # w2_ref : VMEM (Hp, D)  bf16   second-layer weights
    # b2_ref : VMEM (1, D)   f32
    # o_ref  : VMEM (tb, D)  f32
    t = t_ref[0]
    cdtype = w1_ref.dtype
    x = x_ref[...].astype(cdtype)                      # cast in-kernel (VPU, cheap)
    h = jnp.dot(x, w1_ref[...], preferred_element_type=jnp.float32)
    # cat([x, t*1], 1) @ W1 == x @ W1[:D] + t * W1[D]  (time column folded here)
    b1_eff = b1_ref[...] + t * w1t_ref[...]            # (1, Hp) FMA, hidden under MXU
    h = jnp.tanh(h + b1_eff)                           # f32 elementwise / EUP path
    out = jnp.dot(h.astype(cdtype), w2_ref[...], preferred_element_type=jnp.float32)
    o_ref[...] = (out + b2_ref[...]).astype(o_ref.dtype)


def make_params(dim, hidden, key):
    """Deterministic synthetic MLP params (Linear(dim+1, hidden), Linear(hidden, dim))."""
    k1, k2, k3, k4 = jax.random.split(key, 4)
    w1 = jax.random.normal(k1, (dim + 1, hidden), jnp.float32) * 0.1
    b1 = jax.random.normal(k2, (1, hidden), jnp.float32) * 0.1
    w2 = jax.random.normal(k3, (hidden, dim), jnp.float32) * 0.1
    b2 = jax.random.normal(k4, (1, dim), jnp.float32) * 0.1
    return w1, b1, w2, b2


def prepare_params(params, *, compute_dtype=jnp.bfloat16):
    """One-time weight preparation (pad H to a lane multiple, cast to compute dtype).

    Call once and reuse across all ODE f-evals; only t / x vary per step.
    compute_dtype=jnp.float32 gives a full-precision fallback path.
    """
    w1, b1, w2, b2 = params
    D = w1.shape[0] - 1
    H = w1.shape[1]
    Hp = _round_up(H, 128)
    w1x = (jnp.zeros((D, Hp), jnp.float32).at[:, :H].set(w1[:D, :])
           .astype(compute_dtype))                               # (D, Hp)
    w1t = jnp.zeros((1, Hp), jnp.float32).at[:, :H].set(w1[D:, :])   # time row, f32
    b1p = jnp.zeros((1, Hp), jnp.float32).at[:, :H].set(jnp.reshape(b1, (1, H)))
    w2p = (jnp.zeros((Hp, D), jnp.float32).at[:H, :].set(w2)
           .astype(compute_dtype))                               # (Hp, D)
    b2p = jnp.reshape(jnp.asarray(b2, jnp.float32), (1, D))
    return dict(w1x=w1x, w1t=w1t, b1=b1p, w2=w2p, b2=b2p, D=D, H=H, Hp=Hp)


def torch_wrapper_forward(t, x, args=None, *, prepped, tile_b=256):
    """Pallas equivalent of torch_wrapper.forward(t, x, args) for the synthetic MLP."""
    del args
    B, D = x.shape
    assert D == prepped["D"], "feature dim mismatch vs prepared params"
    Hp = prepped["Hp"]

    # torchdyn passes a scalar (0-d) t; per-sample t vectors are out of scope here.
    t_arr = jnp.reshape(jnp.asarray(t, jnp.float32), (1,))

    # Row tile: multiple of 16 (bf16 sublane packing); keep >= 2 grid steps when
    # B allows so the "parallel" batch axis shards across v7x's 2 TensorCores,
    # capped at tile_b (256 default amortizes per-grid-step overhead on v6e).
    half = _round_up(max((B + 1) // 2, 1), 16)
    tb = max(16, min(int(tile_b), half))
    grid = (pl.cdiv(B, tb),)

    cd_bytes = prepped["w1x"].dtype.itemsize
    cost = pl.CostEstimate(
        flops=2 * B * (D * Hp + Hp * D),
        transcendentals=B * Hp,
        bytes_accessed=(
            x.size * x.dtype.itemsize
            + (prepped["w1x"].size + prepped["w2"].size) * cd_bytes
            + (prepped["w1t"].size + prepped["b1"].size + prepped["b2"].size) * 4
            + B * D * 4
        ),
    )

    out = pl.pallas_call(
        _vf_kernel,
        out_shape=jax.ShapeDtypeStruct((B, D), x.dtype),
        grid_spec=pl.GridSpec(
            grid=grid,
            in_specs=[
                pl.BlockSpec(memory_space=pltpu.MemorySpace.SMEM),  # t scalar
                pl.BlockSpec((tb, D), lambda i: (i, 0)),            # x tile (pipelined)
                pl.BlockSpec((D, Hp), lambda i: (0, 0)),            # W1[:D] (resident)
                pl.BlockSpec((1, Hp), lambda i: (0, 0)),            # W1[D] time row
                pl.BlockSpec((1, Hp), lambda i: (0, 0)),            # b1
                pl.BlockSpec((Hp, D), lambda i: (0, 0)),            # W2 (resident)
                pl.BlockSpec((1, D), lambda i: (0, 0)),             # b2
            ],
            out_specs=pl.BlockSpec((tb, D), lambda i: (i, 0)),
        ),
        compiler_params=pltpu.CompilerParams(
            dimension_semantics=("parallel",),          # v7x: shard batch over 2 TCs
            vmem_limit_bytes=32 * 1024 * 1024,          # safe on 64 MiB v7x VMEM
        ),
        cost_estimate=cost,
    )(t_arr, x, prepped["w1x"], prepped["w1t"], prepped["b1"],
      prepped["w2"], prepped["b2"])
    return out


def _reference(t, x, params):
    """Pure-JAX reference matching the PyTorch semantics (explicit concat)."""
    w1, b1, w2, b2 = params
    B = x.shape[0]
    t_col = jnp.broadcast_to(jnp.asarray(t, x.dtype), (B,))[:, None]
    z = jnp.concatenate([x, t_col], axis=1)
    h = jnp.tanh(z @ w1 + b1)
    return h @ w2 + b2


if __name__ == "__main__":
    key = jax.random.PRNGKey(0)
    k_x, k_p = jax.random.split(key)

    # Small shapes consistent with the module; B large enough to exercise the
    # batch grid (tb=128 -> grid=(2,), both v7x TensorCores get work).
    B, D, H = 256, 32, 64
    x = jax.random.normal(k_x, (B, D), jnp.float32)
    t = jnp.float32(0.37)
    params = make_params(D, H, k_p)

    # One-time weight prep (hoisted out of the per-ODE-step path).
    prepped = prepare_params(params, compute_dtype=jnp.bfloat16)

    fwd = jax.jit(functools.partial(torch_wrapper_forward, prepped=prepped))
    out = jax.block_until_ready(fwd(t, x, None))

    ref = _reference(t, x, params)
    assert out.shape == (B, D)
    # bf16 matmul operands (f32 accumulation) -> relaxed tolerance vs f32 ref.
    assert jnp.allclose(out, ref, atol=3e-2, rtol=3e-2), float(
        jnp.max(jnp.abs(out - ref))
    )

    print("KERNEL_OK")
</pallas_src>

<mosaic_0001>
module attributes {stable_mosaic.version = 11 : i64} {
  func.func @_vf_kernel(%arg0: i32, %arg1: memref<1xf32, #tpu.memory_space<smem>>, %arg2: memref<128x32xf32, #tpu.memory_space<vmem>>, %arg3: memref<32x128xbf16, #tpu.memory_space<vmem>>, %arg4: memref<1x128xf32, #tpu.memory_space<vmem>>, %arg5: memref<1x128xf32, #tpu.memory_space<vmem>>, %arg6: memref<128x32xbf16, #tpu.memory_space<vmem>>, %arg7: memref<1x32xf32, #tpu.memory_space<vmem>>, %arg8: memref<128x32xf32, #tpu.memory_space<vmem>>) attributes {dimension_semantics = [#tpu.dimension_semantics<parallel>], iteration_bounds = array<i64: 2>, scalar_prefetch = 0 : i64, scratch_operands = 0 : i64, tpu.core_type = #tpu.core_type<tc>, window_params = [{transform_indices = @transform_0, window_bounds = array<i64: 1>}, {transform_indices = @transform_1, window_bounds = array<i64: 128, 32>}, {pipeline_mode = #tpu.pipeline_mode<synchronous>, transform_indices = @transform_2, window_bounds = array<i64: 32, 128>}, {pipeline_mode = #tpu.pipeline_mode<synchronous>, transform_indices = @transform_3, window_bounds = array<i64: 1, 128>}, {pipeline_mode = #tpu.pipeline_mode<synchronous>, transform_indices = @transform_4, window_bounds = array<i64: 1, 128>}, {pipeline_mode = #tpu.pipeline_mode<synchronous>, transform_indices = @transform_5, window_bounds = array<i64: 128, 32>}, {pipeline_mode = #tpu.pipeline_mode<synchronous>, transform_indices = @transform_6, window_bounds = array<i64: 1, 32>}, {transform_indices = @transform_7, window_bounds = array<i64: 128, 32>}]} {
    %c0 = arith.constant 0 : index
    %0 = memref.load %arg1[%c0] : memref<1xf32, #tpu.memory_space<smem>>
    %c0_0 = arith.constant 0 : index
    %c0_1 = arith.constant 0 : index
    %1 = vector.load %arg2[%c0_0, %c0_1] : memref<128x32xf32, #tpu.memory_space<vmem>>, vector<128x32xf32>
    %2 = arith.truncf %1 : vector<128x32xf32> to vector<128x32xbf16>
    %c0_2 = arith.constant 0 : index
    %c0_3 = arith.constant 0 : index
    %3 = vector.load %arg3[%c0_2, %c0_3] : memref<32x128xbf16, #tpu.memory_space<vmem>>, vector<32x128xbf16>
    %cst = arith.constant dense<0.000000e+00> : vector<128x128xf32>
    %4 = tpu.matmul %2, %3, %cst {dimension_numbers = #tpu.dot_dimension_numbers<[1], [0], [0], [1], [0, 0, 1, 1], [], []>} : vector<128x32xbf16>, vector<32x128xbf16>, vector<128x128xf32> -> vector<128x128xf32>
    %c0_4 = arith.constant 0 : index
    %c0_5 = arith.constant 0 : index
    %5 = vector.load %arg5[%c0_4, %c0_5] : memref<1x128xf32, #tpu.memory_space<vmem>>, vector<1x128xf32>
    %c0_6 = arith.constant 0 : index
    %c0_7 = arith.constant 0 : index
    %6 = vector.load %arg4[%c0_6, %c0_7] : memref<1x128xf32, #tpu.memory_space<vmem>>, vector<1x128xf32>
    %7 = vector.broadcast %0 : f32 to vector<1x128xf32>
    %8 = arith.mulf %7, %6 : vector<1x128xf32>
    %9 = arith.addf %5, %8 : vector<1x128xf32>
    %10 = vector.broadcast %9 : vector<1x128xf32> to vector<128x128xf32>
    %11 = arith.addf %4, %10 : vector<128x128xf32>
    %12 = math.tanh %11 : vector<128x128xf32>
    %13 = arith.truncf %12 : vector<128x128xf32> to vector<128x128xbf16>
    %c0_8 = arith.constant 0 : index
    %c0_9 = arith.constant 0 : index
    %14 = vector.load %arg6[%c0_8, %c0_9] : memref<128x32xbf16, #tpu.memory_space<vmem>>, vector<128x32xbf16>
    %cst_10 = arith.constant dense<0.000000e+00> : vector<128x32xf32>
    %15 = tpu.matmul %13, %14, %cst_10 {dimension_numbers = #tpu.dot_dimension_numbers<[1], [0], [0], [1], [0, 0, 1, 1], [], []>} : vector<128x128xbf16>, vector<128x32xbf16>, vector<128x32xf32> -> vector<128x32xf32>
    %c0_11 = arith.constant 0 : index
    %c0_12 = arith.constant 0 : index
    %16 = vector.load %arg7[%c0_11, %c0_12] : memref<1x32xf32, #tpu.memory_space<vmem>>, vector<1x32xf32>
    %17 = vector.broadcast %16 : vector<1x32xf32> to vector<128x32xf32>
    %18 = arith.addf %15, %17 : vector<128x32xf32>
    %c0_13 = arith.constant 0 : index
    %c0_14 = arith.constant 0 : index
    %19 = vector.load %arg8[%c0_13, %c0_14] : memref<128x32xf32, #tpu.memory_space<vmem>>, vector<128x32xf32>
    tpu.vector_store %arg8[%c0_13, %c0_14], %18 {strides = array<i32>} : memref<128x32xf32, #tpu.memory_space<vmem>>, vector<128x32xf32>,
    return
  }
  func.func @transform_0(%arg0: i32) -> i32 {
    %c0_i32 = arith.constant 0 : i32
    %c0_i32_0 = arith.constant 0 : i32
    return %c0_i32 : i32
  }
  func.func @transform_1(%arg0: i32) -> (i32, i32) {
    %c0_i32 = arith.constant 0 : i32
    %c0_i32_0 = arith.constant 0 : i32
    return %arg0, %c0_i32 : i32, i32
  }
  func.func @transform_2(%arg0: i32) -> (i32, i32) {
    %c0_i32 = arith.constant 0 : i32
    %c0_i32_0 = arith.constant 0 : i32
    %c0_i32_1 = arith.constant 0 : i32
    return %c0_i32, %c0_i32_0 : i32, i32
  }
  func.func @transform_3(%arg0: i32) -> (i32, i32) {
    %c0_i32 = arith.constant 0 : i32
    %c0_i32_0 = arith.constant 0 : i32
    %c0_i32_1 = arith.constant 0 : i32
    return %c0_i32, %c0_i32_0 : i32, i32
  }
  func.func @transform_4(%arg0: i32) -> (i32, i32) {
    %c0_i32 = arith.constant 0 : i32
    %c0_i32_0 = arith.constant 0 : i32
    %c0_i32_1 = arith.constant 0 : i32
    return %c0_i32, %c0_i32_0 : i32, i32
  }
  func.func @transform_5(%arg0: i32) -> (i32, i32) {
    %c0_i32 = arith.constant 0 : i32
    %c0_i32_0 = arith.constant 0 : i32
    %c0_i32_1 = arith.constant 0 : i32
    return %c0_i32, %c0_i32_0 : i32, i32
  }
  func.func @transform_6(%arg0: i32) -> (i32, i32) {
    %c0_i32 = arith.constant 0 : i32
    %c0_i32_0 = arith.constant 0 : i32
    %c0_i32_1 = arith.constant 0 : i32
    return %c0_i32, %c0_i32_0 : i32, i32
  }
  func.func @transform_7(%arg0: i32) -> (i32, i32) {
    %c0_i32 = arith.constant 0 : i32
    %c0_i32_0 = arith.constant 0 : i32
    return %arg0, %c0_i32 : i32, i32
  }
}

</mosaic_0001>

<llo_original>
// kernel: torch_wrapper_forward.1
$region0: #{torch_wrapper_forward.1}
  #allocation0 [shape = 'u32[]', space=smem, size = 0x4, offset = 0x4, fixed_abs, tag = 'smem constant byte address 0x4 - core index']
  #allocation1 [shape = 'u32[72,128]{1,0:T(1,128)}', space=vmem, size = 0x9000, scoped, tag = 'internal scratch']
  #allocation2 [shape = 'f32[1]{0:T(128)S(6)}', space=smem, size = 0x200, scoped, tag = 'scoped memory for torch_wrapper_forward.1']
  %s0 = inlined_call_operand.<no memory space> [shape: f32[1], index: 0, kind: input, shape index: {}]
  %s1 = inlined_call_operand.vmem [shape: f32[256,32], index: 1, kind: input, shape index: {}]
  %s2 = inlined_call_operand.vmem [shape: bf16[32,128], index: 2, kind: input, shape index: {}]
  %s3 = inlined_call_operand.vmem [shape: f32[1,128], index: 3, kind: input, shape index: {}]
  %s4 = inlined_call_operand.vmem [shape: f32[1,128], index: 4, kind: input, shape index: {}]
  %s5 = inlined_call_operand.vmem [shape: bf16[128,32], index: 5, kind: input, shape index: {}]
  %s6 = inlined_call_operand.vmem [shape: f32[1,32], index: 6, kind: input, shape index: {}]
  %s7 = inlined_call_operand.vmem [shape: f32[256,32], index: 7, kind: output, shape index: {}]
  %s8 = sld [smem:[#allocation0]]
  $region61: #{torch_wrapper_forward.1} parent=0
    _
  %s10 = ssub.s32 1, %s8
  %s11 = scalar_select 0, %s10, %s8
  %12 = sst [smem:[#allocation2]] %s0
  loop: start=0, step=1, limit=4
  $region2: #{torch_wrapper_forward.1} parent=0 // loop_pre_header
    _
  $region3: #{torch_wrapper_forward.1} parent=0 // loop_header
    %s14 = sphi 0, %s18
    %p15 = scmp.ge.s32.totalorder %s14, 4
    %s22 = sphi 0, %s22
    %s24 = sphi 0, %s22
    %s25 = sphi 0, %s24
    %s39 = sphi 0, %s25
    %s45 = sphi 0, %s47
    %s48 = sphi 0, %s45
    %s49 = sphi 0, %s48
    %s65 = sphi 0, %s49
    %s69 = sphi 0, %s69
    %s71 = sphi 0, %s69
    %s72 = sphi 0, %s71
    %s86 = sphi 0, %s72
    %s90 = sphi 0, %s90
    %s92 = sphi 0, %s90
    %s93 = sphi 0, %s92
    %s107 = sphi 0, %s93
    %s111 = sphi 0, %s111
    %s113 = sphi 0, %s111
    %s114 = sphi 0, %s113
    %s128 = sphi 0, %s114
    %s132 = sphi 0, %s132
    %s134 = sphi 0, %s132
    %s135 = sphi 0, %s134
    %s149 = sphi 0, %s135
    %s153 = sphi 0, %s153
    %s155 = sphi 0, %s153
    %s156 = sphi 0, %s155
    %s170 = sphi 0, %s156
    %s176 = sphi 0, %s178
    %s179 = sphi 0, %s176
    %s180 = sphi 0, %s179
    %s196 = sphi 0, %s180
  $region4: #{torch_wrapper_forward.1} parent=0 // loop_header_branch
    %17 = sbr.rel (%p15) target = $region8
  $region5: #{torch_wrapper_forward.1} parent=0 // loop_body
    %s19 = ssub.s32 %s14, 1
    %s20 = ssub.s32 %s14, 2
    %s21 = sadd.s32 %s14, 1
    %s23 = sadd.s32 %s22, 1
    %p26 = scmp.eq.s32.totalorder %s14, 1
    %p27 = scmp.ne.s32.totalorder %s22, %s24
    %p28 = scmp.eq.s32.totalorder %s14, 0
    %p29 = por %p27, %p28
    %p30 = scmp.ne.s32.totalorder %s22, %s24
    %p31 = scmp.eq.s32.totalorder %s19, 1
    %p32 = por %p30, %p31
    %p33 = scmp.ne.s32.totalorder %s24, %s25
    %p34 = scmp.eq.s32.totalorder %s19, 0
    %p35 = por %p33, %p34
    %p36 = scmp.ne.s32.totalorder %s24, %s25
    %p37 = scmp.eq.s32.totalorder %s20, 1
    %p38 = por %p36, %p37
    %p40 = scmp.ne.s32.totalorder %s25, %s39
    %p41 = scmp.eq.s32.totalorder %s20, 0
    %p42 = por %p40, %p41
    %s43 = ssub.s32 %s14, %s21
    %p44 = scmp.eq.s32.totalorder %s43, 0
    %s46 = sadd.s32 %s45, 1
    %s47 = scalar_select %p44, %s45, %s46
    %p50 = pneg %p44
    %p51 = scmp.eq.s32.totalorder %s14, 1
    %p52 = por %p50, %p51
    %p53 = scmp.ne.s32.totalorder %s45, %s48
    %p54 = scmp.eq.s32.totalorder %s14, 0
    %p55 = por %p53, %p54
    %p56 = scmp.ne.s32.totalorder %s45, %s48
    %p57 = scmp.eq.s32.totalorder %s19, 1
    %p58 = por %p56, %p57
    %p59 = scmp.ne.s32.totalorder %s48, %s49
    %p60 = scmp.eq.s32.totalorder %s19, 0
    %p61 = por %p59, %p60
    %p62 = scmp.ne.s32.totalorder %s48, %s49
    %p63 = scmp.eq.s32.totalorder %s20, 1
    %p64 = por %p62, %p63
    %p66 = scmp.ne.s32.totalorder %s49, %s65
    %p67 = scmp.eq.s32.totalorder %s20, 0
    %p68 = por %p66, %p67
    %s70 = sadd.s32 %s69, 1
    %p73 = scmp.eq.s32.totalorder %s14, 1
    %p74 = scmp.ne.s32.totalorder %s69, %s71
    %p75 = scmp.eq.s32.totalorder %s14, 0
    %p76 = por %p74, %p75
    %p77 = scmp.ne.s32.totalorder %s69, %s71
    %p78 = scmp.eq.s32.totalorder %s19, 1
    %p79 = por %p77, %p78
    %p80 = scmp.ne.s32.totalorder %s71, %s72
    %p81 = scmp.eq.s32.totalorder %s19, 0
    %p82 = por %p80, %p81
    %p83 = scmp.ne.s32.totalorder %s71, %s72
    %p84 = scmp.eq.s32.totalorder %s20, 1
    %p85 = por %p83, %p84
    %p87 = scmp.ne.s32.totalorder %s72, %s86
    %p88 = scmp.eq.s32.totalorder %s20, 0
    %p89 = por %p87, %p88
    %s91 = sadd.s32 %s90, 1
    %p94 = scmp.eq.s32.totalorder %s14, 1
    %p95 = scmp.ne.s32.totalorder %s90, %s92
    %p96 = scmp.eq.s32.totalorder %s14, 0
    %p97 = por %p95, %p96
    %p98 = scmp.ne.s32.totalorder %s90, %s92
    %p99 = scmp.eq.s32.totalorder %s19, 1
    %p100 = por %p98, %p99
    %p101 = scmp.ne.s32.totalorder %s92, %s93
    %p102 = scmp.eq.s32.totalorder %s19, 0
    %p103 = por %p101, %p102
    %p104 = scmp.ne.s32.totalorder %s92, %s93
    %p105 = scmp.eq.s32.totalorder %s20, 1
    %p106 = por %p104, %p105
    %p108 = scmp.ne.s32.totalorder %s93, %s107
    %p109 = scmp.eq.s32.totalorder %s20, 0
    %p110 = por %p108, %p109
    %s112 = sadd.s32 %s111, 1
    %p115 = scmp.eq.s32.totalorder %s14, 1
    %p116 = scmp.ne.s32.totalorder %s111, %s113
    %p117 = scmp.eq.s32.totalorder %s14, 0
    %p118 = por %p116, %p117
    %p119 = scmp.ne.s32.totalorder %s111, %s113
    %p120 = scmp.eq.s32.totalorder %s19, 1
    %p121 = por %p119, %p120
    %p122 = scmp.ne.s32.totalorder %s113, %s114
    %p123 = scmp.eq.s32.totalorder %s19, 0
    %p124 = por %p122, %p123
    %p125 = scmp.ne.s32.totalorder %s113, %s114
    %p126 = scmp.eq.s32.totalorder %s20, 1
    %p127 = por %p125, %p126
    %p129 = scmp.ne.s32.totalorder %s114, %s128
    %p130 = scmp.eq.s32.totalorder %s20, 0
    %p131 = por %p129, %p130
    %s133 = sadd.s32 %s132, 1
    %p136 = scmp.eq.s32.totalorder %s14, 1
    %p137 = scmp.ne.s32.totalorder %s132, %s134
    %p138 = scmp.eq.s32.totalorder %s14, 0
    %p139 = por %p137, %p138
    %p140 = scmp.ne.s32.totalorder %s132, %s134
    %p141 = scmp.eq.s32.totalorder %s19, 1
    %p142 = por %p140, %p141
    %p143 = scmp.ne.s32.totalorder %s134, %s135
    %p144 = scmp.eq.s32.totalorder %s19, 0
    %p145 = por %p143, %p144
    %p146 = scmp.ne.s32.totalorder %s134, %s135
    %p147 = scmp.eq.s32.totalorder %s20, 1
    %p148 = por %p146, %p147
    %p150 = scmp.ne.s32.totalorder %s135, %s149
    %p151 = scmp.eq.s32.totalorder %s20, 0
    %p152 = por %p150, %p151
    %s154 = sadd.s32 %s153, 1
    %p157 = scmp.eq.s32.totalorder %s14, 1
    %p158 = scmp.ne.s32.totalorder %s153, %s155
    %p159 = scmp.eq.s32.totalorder %s14, 0
    %p160 = por %p158, %p159
    %p161 = scmp.ne.s32.totalorder %s153, %s155
    %p162 = scmp.eq.s32.totalorder %s19, 1
    %p163 = por %p161, %p162
    %p164 = scmp.ne.s32.totalorder %s155, %s156
    %p165 = scmp.eq.s32.totalorder %s19, 0
    %p166 = por %p164, %p165
    %p167 = scmp.ne.s32.totalorder %s155, %s156
    %p168 = scmp.eq.s32.totalorder %s20, 1
    %p169 = por %p167, %p168
    %p171 = scmp.ne.s32.totalorder %s156, %s170
    %p172 = scmp.eq.s32.totalorder %s20, 0
    %p173 = por %p171, %p172
    %s174 = ssub.s32 %s14, %s21
    %p175 = scmp.eq.s32.totalorder %s174, 0
    %s177 = sadd.s32 %s176, 1
    %s178 = scalar_select %p175, %s176, %s177
    %p181 = pneg %p175
    %p182 = scmp.eq.s32.totalorder %s14, 1
    %p183 = por %p181, %p182
    %p184 = scmp.ne.s32.totalorder %s176, %s179
    %p185 = scmp.eq.s32.totalorder %s14, 0
    %p186 = por %p184, %p185
    %p187 = scmp.ne.s32.totalorder %s176, %s179
    %p188 = scmp.eq.s32.totalorder %s19, 1
    %p189 = por %p187, %p188
    %p190 = scmp.ne.s32.totalorder %s179, %s180
    %p191 = scmp.eq.s32.totalorder %s19, 0
    %p192 = por %p190, %p191
    %p193 = scmp.ne.s32.totalorder %s179, %s180
    %p194 = scmp.eq.s32.totalorder %s20, 1
    %p195 = por %p193, %p194
    %p197 = scmp.ne.s32.totalorder %s180, %s196
    %p198 = scmp.eq.s32.totalorder %s20, 0
    %p199 = por %p197, %p198
    %p200 = scmp.le.s32.totalorder 1, %s14
    %p201 = scmp.lt.s32.totalorder %s14, 3
    %p202 = pnand %p200, %p201
    %p203 = pneg %p202
    // Predicated region
    $region9: #{torch_wrapper_forward.1} parent=5 // pred_check
      _
    $region10: #{torch_wrapper_forward.1} parent=5 // pred_check_branch
      %205 = sbr.rel (%p202) target = $region12
    $region11: #{torch_wrapper_forward.1} parent=5 // pred_region
      %s206 = ssub.s32 %s14, 1
      // Predicated region
      $region13: #{torch_wrapper_forward.1} parent=11 // pred_check
        %p207 = pneg %p35
      $region14: #{torch_wrapper_forward.1} parent=11 // pred_check_branch
        %209 = sbr.rel (%p207) target = $region16
      $region15: #{torch_wrapper_forward.1} parent=11 // pred_region
        _
      $region16: #{torch_wrapper_forward.1} parent=11 // pred_fallthru
        _
      // Predicated region
      $region17: #{torch_wrapper_forward.1} parent=11 // pred_check
        %p210 = pneg %p82
      $region18: #{torch_wrapper_forward.1} parent=11 // pred_check_branch
        %212 = sbr.rel (%p210) target = $region20
      $region19: #{torch_wrapper_forward.1} parent=11 // pred_region
        _
      $region20: #{torch_wrapper_forward.1} parent=11 // pred_fallthru
        _
      // Predicated region
      $region21: #{torch_wrapper_forward.1} parent=11 // pred_check
        %p213 = pneg %p103
      $region22: #{torch_wrapper_forward.1} parent=11 // pred_check_branch
        %215 = sbr.rel (%p213) target = $region24
      $region23: #{torch_wrapper_forward.1} parent=11 // pred_region
        _
      $region24: #{torch_wrapper_forward.1} parent=11 // pred_fallthru
        _
      // Predicated region
      $region25: #{torch_wrapper_forward.1} parent=11 // pred_check
        %p216 = pneg %p124
      $region26: #{torch_wrapper_forward.1} parent=11 // pred_check_branch
        %218 = sbr.rel (%p216) target = $region28
      $region27: #{torch_wrapper_forward.1} parent=11 // pred_region
        _
      $region28: #{torch_wrapper_forward.1} parent=11 // pred_fallthru
        _
      // Predicated region
      $region29: #{torch_wrapper_forward.1} parent=11 // pred_check
        %p219 = pneg %p145
      $region30: #{torch_wrapper_forward.1} parent=11 // pred_check_branch
        %221 = sbr.rel (%p219) target = $region32
      $region31: #{torch_wrapper_forward.1} parent=11 // pred_region
        _
      $region32: #{torch_wrapper_forward.1} parent=11 // pred_fallthru
        _
      // Predicated region
      $region33: #{torch_wrapper_forward.1} parent=11 // pred_check
        %p222 = pneg %p166
      $region34: #{torch_wrapper_forward.1} parent=11 // pred_check_branch
        %224 = sbr.rel (%p222) target = $region36
      $region35: #{torch_wrapper_forward.1} parent=11 // pred_region
        _
      $region36: #{torch_wrapper_forward.1} parent=11 // pred_fallthru
        _
    $region12: #{torch_wrapper_forward.1} parent=5 // pred_fallthru
      _
    %p225 = scmp.lt.s32.totalorder %s14, 2
    // Predicated region
    $region37: #{torch_wrapper_forward.1} parent=5 // pred_check
      %p226 = pneg %p225
    $region38: #{torch_wrapper_forward.1} parent=5 // pred_check_branch
      %228 = sbr.rel (%p226) target = $region40
    $region39: #{torch_wrapper_forward.1} parent=5 // pred_region
      // Predicated region
      $region41: #{torch_wrapper_forward.1} parent=39 // pred_check
        %p229 = pneg %p55
      $region42: #{torch_wrapper_forward.1} parent=39 // pred_check_branch
        %231 = sbr.rel (%p229) target = $region44
      $region43: #{torch_wrapper_forward.1} parent=39 // pred_region
        %s232 = smul.u32 16, %s14
        %p233 = scmp.lt.s32.totalorder %s232, 31
        %s234 = scalar_select %p233, %s232, 31
        %s235 = smul.addr %s234, 8
        %s236 = scalar_lea.vmem %s1, %s235
        %s237 = smul.u32 16, %s14
      $region44: #{torch_wrapper_forward.1} parent=39 // pred_fallthru
        _
    $region40: #{torch_wrapper_forward.1} parent=5 // pred_fallthru
      _
    %p238 = scmp.le.s32.totalorder 1, %s14
    %p239 = scmp.lt.s32.totalorder %s14, 3
    %p240 = pnand %p238, %p239
    %p241 = pneg %p240
    // Predicated region
    $region45: #{torch_wrapper_forward.1} parent=5 // pred_check
      _
    $region46: #{torch_wrapper_forward.1} parent=5 // pred_check_branch
      %243 = sbr.rel (%p240) target = $region48
    $region47: #{torch_wrapper_forward.1} parent=5 // pred_region
      %s244 = ssub.s32 %s14, 1
      %p245 = pneg %p35
      %p246 = pneg %p32
      %s247 = smul.u32 16, %s19
      %p248 = scmp.lt.s32.totalorder %s247, 31
      %s249 = scalar_select %p248, %s247, 31
      %s250 = smul.addr %s249, 8
      %s251 = scalar_lea.vmem %s1, %s250
      %p252 = pneg %p61
      %p253 = pneg %p58
      %p254 = pneg %p82
      %p255 = pneg %p79
      %p256 = pneg %p103
      %p257 = pneg %p100
      %p258 = pneg %p124
      %p259 = pneg %p121
      %p260 = pneg %p145
      %p261 = pneg %p142
      %p262 = pneg %p166
      %p263 = pneg %p163
      %p264 = pneg %p192
      %p265 = pneg %p189
      %s266 = smul.u32 16, %s19
      %p267 = scmp.lt.s32.totalorder %s266, 31
      %s268 = scalar_select %p267, %s266, 31
      %s269 = smul.addr %s268, 8
      %s270 = scalar_lea.vmem %s7, %s269
      %s271 = smul.u32 16, %s19
      %p272 = scmp.lt.s32.totalorder %s271, 31
      %s273 = scalar_select %p272, %s271, 31
      %s274 = smul.addr %s273, 8
      %s275 = scalar_lea.vmem %s1, %s274
      %s276 = smul.u32 16, %s19
      %s277 = smul.u32 16, %s19
      %p278 = scmp.lt.s32.totalorder %s277, 31
      %s279 = scalar_select %p278, %s277, 31
      %s280 = smul.addr %s279, 8
      %s281 = scalar_lea.vmem %s7, %s280
      %s282 = smul.u32 16, %s19
      %s284 = sld [smem:[#allocation2]]
      %v285 = vld [vmem:[%s275] sm:$0xff]
      %v286 = vld [vmem:[%s275 + $0x8] sm:$0xff]
      %v287 = vld [vmem:[%s275 + $0x10] sm:$0xff]
      %v288 = vld [vmem:[%s275 + $0x18] sm:$0xff]
      %v289 = vld [vmem:[%s275 + $0x20] sm:$0xff]
      %v290 = vld [vmem:[%s275 + $0x28] sm:$0xff]
      %v291 = vld [vmem:[%s275 + $0x30] sm:$0xff]
      %v292 = vld [vmem:[%s275 + $0x38] sm:$0xff]
      %v293 = vld [vmem:[%s275 + $0x40] sm:$0xff]
      %v294 = vld [vmem:[%s275 + $0x48] sm:$0xff]
      %v295 = vld [vmem:[%s275 + $0x50] sm:$0xff]
      %v296 = vld [vmem:[%s275 + $0x58] sm:$0xff]
      %v297 = vld [vmem:[%s275 + $0x60] sm:$0xff]
      %v298 = vld [vmem:[%s275 + $0x68] sm:$0xff]
      %v299 = vld [vmem:[%s275 + $0x70] sm:$0xff]
      %v300 = vld [vmem:[%s275 + $0x78] sm:$0xff]
      %v301 = vpack.c.bf16 %v286, %v285
      %v302 = vpack.c.bf16 %v288, %v287
      %v303 = vpack.c.bf16 %v290, %v289
      %v304 = vpack.c.bf16 %v292, %v291
      %v305 = vpack.c.bf16 %v294, %v293
      %v306 = vpack.c.bf16 %v296, %v295
      %v307 = vpack.c.bf16 %v298, %v297
      %v308 = vpack.c.bf16 %v300, %v299
      %v309 = vld [vmem:[%s2] sm:$0xf]
      %v310 = vld [vmem:[%s2 + $0x4] sm:$0xf]
      %v311 = vld [vmem:[%s2 + $0x8] sm:$0xf]
      %v312 = vld [vmem:[%s2 + $0xc] sm:$0xf]
      %v313 = vld [vmem:[%s4] sm:$0x1]
      %v314 = vld [vmem:[%s3] sm:$0x1]
      %v315 = vstv %s284
      %v316 = vmul.f32 %v315, %v314
      %v317 = vadd.f32 %v313, %v316
      %v319 = vperm.slane %v317, 0
      %v325 = vunpack.c.l.b16 %v309
      %v326 = vunpack.c.l.b16 %v310
      %v327 = vunpack.c.l.b16 %v311
      %v328 = vunpack.c.l.b16 %v312
      %v329 = vpack.c.b16 %v326, %v325
      %v330 = vpack.c.b16 %v328, %v327
      %vm333 = vcmask 261120
      %v335 = vsel %vm333, %v301, 0
      %v338 = vsel %vm333, %v302, 0
      %v341 = vsel %vm333, %v303, 0
      %v344 = vsel %vm333, %v304, 0
      %v347 = vsel %vm333, %v305, 0
      %v350 = vsel %vm333, %v306, 0
      %v353 = vsel %vm333, %v307, 0
      %v356 = vsel %vm333, %v308, 0
      %358 = vmatpush.bf16.msra.mxu0 0
      %359 = vmatpush.bf16.msra.mxu0 0
      %360 = vmatpush.bf16.msra.mxu0 0
      %361 = vmatpush.bf16.msra.mxu0 0
      %362 = vmatpush.bf16.msra.mxu0 0
      %363 = vmatpush.bf16.msra.mxu0 0
      %364 = vmatpush.bf16.msra.mxu0 %v330
      %365 = vmatpush.bf16.msra.mxu0 %v329
      %366 = vmatmul.bf16.gmra.mxu0 %v335
      %v367 = vpop.f32.mrf.mxu0
      %v368 = vadd.f32 %v319, %v367
      %v369 = vpop.f32.mrf.mxu0
      %v370 = vadd.f32 %v319, %v369
      %371 = vmatmul.bf16.gmra.mxu0 %v338
      %v372 = vpop.f32.mrf.mxu0
      %v373 = vadd.f32 %v319, %v372
      %v374 = vpop.f32.mrf.mxu0
      %v375 = vadd.f32 %v319, %v374
      %376 = vmatmul.bf16.gmra.mxu0 %v341
      %v377 = vpop.f32.mrf.mxu0
      %v378 = vadd.f32 %v319, %v377
      %v379 = vpop.f32.mrf.mxu0
      %v380 = vadd.f32 %v319, %v379
      %381 = vmatmul.bf16.gmra.mxu0 %v344
      %v382 = vpop.f32.mrf.mxu0
      %v383 = vadd.f32 %v319, %v382
      %v384 = vpop.f32.mrf.mxu0
      %v385 = vadd.f32 %v319, %v384
      %386 = vmatmul.bf16.gmra.mxu0 %v347
      %v387 = vpop.f32.mrf.mxu0
      %v388 = vadd.f32 %v319, %v387
      %v389 = vpop.f32.mrf.mxu0
      %v390 = vadd.f32 %v319, %v389
      %391 = vmatmul.bf16.gmra.mxu0 %v350
      %v392 = vpop.f32.mrf.mxu0
      %v393 = vadd.f32 %v319, %v392
      %v394 = vpop.f32.mrf.mxu0
      %v395 = vadd.f32 %v319, %v394
      %396 = vmatmul.bf16.gmra.mxu0 %v353
      %v397 = vpop.f32.mrf.mxu0
      %v398 = vadd.f32 %v319, %v397
      %v399 = vpop.f32.mrf.mxu0
      %v400 = vadd.f32 %v319, %v399
      %401 = vmatmul.bf16.gmra.mxu0 %v356
      %v402 = vpop.f32.mrf.mxu0
      %v403 = vadd.f32 %v319, %v402
      %v404 = vpop.f32.mrf.mxu0
      %v405 = vadd.f32 %v319, %v404
      %406 = vdwg.mxu0
      %v407 = vtanh.pop %v368
      %v408 = vtanh.pop %v370
      %v409 = vtanh.pop %v373
      %v410 = vtanh.pop %v375
      %v411 = vtanh.pop %v378
      %v412 = vtanh.pop %v380
      %v413 = vtanh.pop %v383
      %v414 = vtanh.pop %v385
      %v415 = vtanh.pop %v388
      %v416 = vtanh.pop %v390
      %v417 = vtanh.pop %v393
      %v418 = vtanh.pop %v395
      %v419 = vtanh.pop %v398
      %v420 = vtanh.pop %v400
      %v421 = vtanh.pop %v403
      %v422 = vtanh.pop %v405
      %v423 = vpack.c.bf16 %v408, %v407
      %v424 = vpack.c.bf16 %v410, %v409
      %v425 = vpack.c.bf16 %v412, %v411
      %v426 = vpack.c.bf16 %v414, %v413
      %v427 = vpack.c.bf16 %v416, %v415
      %v428 = vpack.c.bf16 %v418, %v417
      %v429 = vpack.c.bf16 %v420, %v419
      %v430 = vpack.c.bf16 %v422, %v421
      %v431 = vld [vmem:[%s5] sm:$0xf]
      %v432 = vld [vmem:[%s5 + $0x4] sm:$0xf]
      %v433 = vld [vmem:[%s5 + $0x8] sm:$0xf]
      %v434 = vld [vmem:[%s5 + $0xc] sm:$0xf]
      %v435 = vld [vmem:[%s5 + $0x10] sm:$0xf]
      %v436 = vld [vmem:[%s5 + $0x14] sm:$0xf]
      %v437 = vld [vmem:[%s5 + $0x18] sm:$0xf]
      %v438 = vld [vmem:[%s5 + $0x1c] sm:$0xf]
      %v439 = vld [vmem:[%s5 + $0x20] sm:$0xf]
      %v440 = vld [vmem:[%s5 + $0x24] sm:$0xf]
      %v441 = vld [vmem:[%s5 + $0x28] sm:$0xf]
      %v442 = vld [vmem:[%s5 + $0x2c] sm:$0xf]
      %v443 = vld [vmem:[%s5 + $0x30] sm:$0xf]
      %v444 = vld [vmem:[%s5 + $0x34] sm:$0xf]
      %v445 = vld [vmem:[%s5 + $0x38] sm:$0xf]
      %v446 = vld [vmem:[%s5 + $0x3c] sm:$0xf]
      %v447 = vld [vmem:[%s6] sm:$0x1]
      %v449 = vperm.slane %v447, 0
      %v467 = vunpack.c.l.b16 %v431
      %v468 = vunpack.c.l.b16 %v432
      %v469 = vunpack.c.l.b16 %v433
      %v470 = vunpack.c.l.b16 %v434
      %v471 = vunpack.c.l.b16 %v435
      %v472 = vunpack.c.l.b16 %v436
      %v473 = vunpack.c.l.b16 %v437
      %v474 = vunpack.c.l.b16 %v438
      %v475 = vunpack.c.l.b16 %v439
      %v476 = vunpack.c.l.b16 %v440
      %v477 = vunpack.c.l.b16 %v441
      %v478 = vunpack.c.l.b16 %v442
      %v479 = vunpack.c.l.b16 %v443
      %v480 = vunpack.c.l.b16 %v444
      %v481 = vunpack.c.l.b16 %v445
      %v482 = vunpack.c.l.b16 %v446
      %v483 = vpack.c.b16 %v468, %v467
      %v484 = vpack.c.b16 %v470, %v469
      %v485 = vpack.c.b16 %v472, %v471
      %v486 = vpack.c.b16 %v474, %v473
      %v487 = vpack.c.b16 %v476, %v475
      %v488 = vpack.c.b16 %v478, %v477
      %v489 = vpack.c.b16 %v480, %v479
      %v490 = vpack.c.b16 %v482, %v481
      %499 = vmatpush.bf16.msra.mxu0 %v490
      %500 = vmatpush.bf16.msra.mxu0 %v489
      %501 = vmatpush.bf16.msra.mxu0 %v488
      %502 = vmatpush.bf16.msra.mxu0 %v487
      %503 = vmatpush.bf16.msra.mxu0 %v486
      %504 = vmatpush.bf16.msra.mxu0 %v485
      %505 = vmatpush.bf16.msra.mxu0 %v484
      %506 = vmatpush.bf16.msra.mxu0 %v483
      %507 = vmatmul.bf16.gmra.mxu0 %v423
      %v508 = vpop.f32.mrf.mxu0
      %v509 = vadd.f32 %v449, %v508
      %v510 = vpop.f32.mrf.mxu0
      %v511 = vadd.f32 %v449, %v510
      %512 = vmatmul.bf16.gmra.mxu0 %v424
      %v513 = vpop.f32.mrf.mxu0
      %v514 = vadd.f32 %v449, %v513
      %v515 = vpop.f32.mrf.mxu0
      %v516 = vadd.f32 %v449, %v515
      %517 = vmatmul.bf16.gmra.mxu0 %v425
      %v518 = vpop.f32.mrf.mxu0
      %v519 = vadd.f32 %v449, %v518
      %v520 = vpop.f32.mrf.mxu0
      %v521 = vadd.f32 %v449, %v520
      %522 = vmatmul.bf16.gmra.mxu0 %v426
      %v523 = vpop.f32.mrf.mxu0
      %v524 = vadd.f32 %v449, %v523
      %v525 = vpop.f32.mrf.mxu0
      %v526 = vadd.f32 %v449, %v525
      %527 = vmatmul.bf16.gmra.mxu0 %v427
      %v528 = vpop.f32.mrf.mxu0
      %v529 = vadd.f32 %v449, %v528
      %v530 = vpop.f32.mrf.mxu0
      %v531 = vadd.f32 %v449, %v530
      %532 = vmatmul.bf16.gmra.mxu0 %v428
      %v533 = vpop.f32.mrf.mxu0
      %v534 = vadd.f32 %v449, %v533
      %v535 = vpop.f32.mrf.mxu0
      %v536 = vadd.f32 %v449, %v535
      %537 = vmatmul.bf16.gmra.mxu0 %v429
      %v538 = vpop.f32.mrf.mxu0
      %v539 = vadd.f32 %v449, %v538
      %v540 = vpop.f32.mrf.mxu0
      %v541 = vadd.f32 %v449, %v540
      %542 = vmatmul.bf16.gmra.mxu0 %v430
      %v543 = vpop.f32.mrf.mxu0
      %v544 = vadd.f32 %v449, %v543
      %v545 = vpop.f32.mrf.mxu0
      %v546 = vadd.f32 %v449, %v545
      %547 = vdwg.mxu0
      %548 = vst.msk [vmem:[%s281] sm:$0xff] %vm333, %v509
      %549 = vst.msk [vmem:[%s281 + $0x8] sm:$0xff] %vm333, %v511
      %550 = vst.msk [vmem:[%s281 + $0x10] sm:$0xff] %vm333, %v514
      %551 = vst.msk [vmem:[%s281 + $0x18] sm:$0xff] %vm333, %v516
      %552 = vst.msk [vmem:[%s281 + $0x20] sm:$0xff] %vm333, %v519
      %553 = vst.msk [vmem:[%s281 + $0x28] sm:$0xff] %vm333, %v521
      %554 = vst.msk [vmem:[%s281 + $0x30] sm:$0xff] %vm333, %v524
      %555 = vst.msk [vmem:[%s281 + $0x38] sm:$0xff] %vm333, %v526
      %556 = vst.msk [vmem:[%s281 + $0x40] sm:$0xff] %vm333, %v529
      %557 = vst.msk [vmem:[%s281 + $0x48] sm:$0xff] %vm333, %v531
      %558 = vst.msk [vmem:[%s281 + $0x50] sm:$0xff] %vm333, %v534
      %559 = vst.msk [vmem:[%s281 + $0x58] sm:$0xff] %vm333, %v536
      %560 = vst.msk [vmem:[%s281 + $0x60] sm:$0xff] %vm333, %v539
      %561 = vst.msk [vmem:[%s281 + $0x68] sm:$0xff] %vm333, %v541
      %562 = vst.msk [vmem:[%s281 + $0x70] sm:$0xff] %vm333, %v544
      %563 = vst.msk [vmem:[%s281 + $0x78] sm:$0xff] %vm333, %v546
      %s564 = smul.u32 16, %s19
      %p565 = scmp.lt.s32.totalorder %s564, 31
      %s566 = scalar_select %p565, %s564, 31
      %s567 = smul.addr %s566, 8
      %s568 = scalar_lea.vmem %s7, %s567
      // Predicated region
      $region49: #{torch_wrapper_forward.1} parent=47 // pred_check
        %p569 = pneg %p189
      $region50: #{torch_wrapper_forward.1} parent=47 // pred_check_branch
        %571 = sbr.rel (%p569) target = $region52
      $region51: #{torch_wrapper_forward.1} parent=47 // pred_region
        %s572 = smul.u32 16, %s19
      $region52: #{torch_wrapper_forward.1} parent=47 // pred_fallthru
        _
    $region48: #{torch_wrapper_forward.1} parent=5 // pred_fallthru
      _
    %p573 = scmp.le.s32.totalorder 2, %s14
    // Predicated region
    $region53: #{torch_wrapper_forward.1} parent=5 // pred_check
      %p574 = pneg %p573
    $region54: #{torch_wrapper_forward.1} parent=5 // pred_check_branch
      %576 = sbr.rel (%p574) target = $region56
    $region55: #{torch_wrapper_forward.1} parent=5 // pred_region
      %s577 = ssub.s32 %s14, 2
      // Predicated region
      $region57: #{torch_wrapper_forward.1} parent=55 // pred_check
        %p578 = pneg %p195
      $region58: #{torch_wrapper_forward.1} parent=55 // pred_check_branch
        %580 = sbr.rel (%p578) target = $region60
      $region59: #{torch_wrapper_forward.1} parent=55 // pred_region
        %s581 = smul.u32 16, %s20
        %p582 = scmp.lt.s32.totalorder %s581, 31
        %s583 = scalar_select %p582, %s581, 31
        %s584 = smul.addr %s583, 8
        %s585 = scalar_lea.vmem %s7, %s584
      $region60: #{torch_wrapper_forward.1} parent=55 // pred_fallthru
        _
    $region56: #{torch_wrapper_forward.1} parent=5 // pred_fallthru
      _
  $region6: #{torch_wrapper_forward.1} parent=0 // loop_footer
    %s18 = sadd.s32 1, %s14
  $region7: #{torch_wrapper_forward.1} parent=0 // loop_footer_branch
    %13 = sbr.rel target = $region3
  $region8: #{torch_wrapper_forward.1} parent=0 // loop_exit
    _

</llo_original>
